<compile_context>
chip_gen: v7x
topology: tpu7x:2x2x1
jax: 0.10.0
libtpu: 0.0.40
codegen_flags: <defaults>
</compile_context>

<pallas_src>
import jax
import jax.numpy as jnp
from jax.experimental import pallas as pl
from jax.experimental.pallas import tpu as pltpu


def _round_up(x, m):
    return ((x + m - 1) // m) * m


def adj_matmul_kernel(w_ref, x_ref, r_ref, o_ref, acc_ref):
    """One (i, k) grid step of  out = W @ X + R  with f32 accumulation.

    w_ref:   (tm, tk) bf16 adjacency tile   -> block (i, k)   (streamed)
    x_ref:   (tk, Dp) bf16 embedding tile   -> block (k, 0)
    r_ref:   (tm, Dp) f32  residual tile    -> block (i, 0)
    o_ref:   (tm, Dp) f32  output tile      -> block (i, 0)
    acc_ref: (tm, Dp) f32  VMEM accumulator scratch
    """
    k = pl.program_id(1)

    @pl.when(k == 0)
    def _():
        acc_ref[...] = r_ref[...]

    acc_ref[...] += jnp.dot(w_ref[...], x_ref[...],
                            preferred_element_type=jnp.float32)

    @pl.when(k == pl.num_programs(1) - 1)
    def _():
        o_ref[...] = acc_ref[...]


def adj_matmul_residual(w_bf16, x_f32, r_f32, *, tm=256, tk=256,
                        vmem_limit_bytes=48 << 20):
    """out = w_bf16 @ x_f32 + r_f32, streamed & tiled on the MXU.

    w_bf16: (M, K) bf16 adjacency (M, K multiples of tm/tk)
    x_f32:  (K, Dp) f32 embeddings (cast to bf16 at the call boundary)
    r_f32:  (M, Dp) f32 residual
    """
    M, K = w_bf16.shape
    _, Dp = x_f32.shape
    grid = (M // tm, K // tk)
    return pl.pallas_call(
        adj_matmul_kernel,
        out_shape=jax.ShapeDtypeStruct((M, Dp), jnp.float32),
        grid_spec=pltpu.PrefetchScalarGridSpec(
            num_scalar_prefetch=0,
            grid=grid,
            in_specs=[
                pl.BlockSpec((tm, tk), lambda i, k: (i, k)),   # adjacency tile
                pl.BlockSpec((tk, Dp), lambda i, k: (k, 0)),   # embeddings
                pl.BlockSpec((tm, Dp), lambda i, k: (i, 0)),   # residual
            ],
            out_specs=pl.BlockSpec((tm, Dp), lambda i, k: (i, 0)),
            scratch_shapes=[pltpu.VMEM((tm, Dp), jnp.float32)],
        ),
        compiler_params=pltpu.CompilerParams(
            dimension_semantics=("parallel", "arbitrary"),
            vmem_limit_bytes=vmem_limit_bytes,
        ),
    )(w_bf16, x_f32.astype(jnp.bfloat16), r_f32)


def lgcn_encoder_forward(S, A, user_emb, item_emb, n_layers, *, tm=256, tk=256):
    """LGCN_Encoder.forward: returns (user_all_embeddings, item_all_embeddings)."""
    n_users, D = user_emb.shape
    n_items = item_emb.shape[0]
    N = n_users + n_items

    blk = max(tm, tk)
    Dp = _round_up(D, 128)          # lane-dense embedding width
    Up = _round_up(n_users, blk)    # padded social block (Up <= Np)
    Np = _round_up(N, blk)          # padded node count

    # ---- padding / dtype glue (plain JAX, outside the kernel) ----
    ego = jnp.concatenate([user_emb, item_emb], axis=0)
    ego_pad = jnp.zeros((Np, Dp), jnp.float32).at[:N, :D].set(ego)

    # S only padded to its user block (not (N, N)); zeros outside the real
    # user block keep item / padding rows untouched through the residual.
    S_pad = jnp.zeros((Up, Up), jnp.bfloat16).at[:n_users, :n_users].set(
        S.astype(jnp.bfloat16))
    A_pad = jnp.zeros((Np, Np), jnp.bfloat16).at[:N, :N].set(
        A.astype(jnp.bfloat16))

    zero_res = jnp.zeros((Np, Dp), jnp.float32)

    acc = ego_pad  # running sum over layers (layer 0 = ego)
    for _ in range(n_layers):
        # Social update on the top block:  top = ego[:Up] + S @ ego[:Up]
        # (rows >= n_users have zero S rows, so they pass through unchanged).
        top = adj_matmul_residual(S_pad, ego_pad[:Up], ego_pad[:Up],
                                  tm=tm, tk=tk)
        ego_pad = jnp.concatenate([top, ego_pad[Up:]], axis=0)
        # Graph propagation:  ego = norm_adj @ ego
        ego_pad = adj_matmul_residual(A_pad, ego_pad, zero_res, tm=tm, tk=tk)
        acc = acc + ego_pad

    mean = (acc * (1.0 / float(n_layers + 1)))[:N, :D]
    return mean[:n_users], mean[n_users:]


def xavier_uniform(key, rows, cols):
    bound = jnp.sqrt(6.0 / (rows + cols))
    return jax.random.uniform(key, (rows, cols), jnp.float32, -bound, bound)


def reference_forward(S, A, user_emb, item_emb, n_layers):
    """Pure-JAX f32 mirror of the PyTorch forward (sparse mm done densely)."""
    n_users = user_emb.shape[0]
    ego = jnp.concatenate([user_emb, item_emb], axis=0)
    all_embeddings = [ego]
    for _ in range(n_layers):
        U, V = ego[:n_users], ego[n_users:]
        U = U + S @ U
        ego = jnp.concatenate([U, V], axis=0)
        ego = A @ ego
        all_embeddings.append(ego)
    stacked = jnp.stack(all_embeddings, axis=1)
    mean = jnp.mean(stacked, axis=1)
    return mean[:n_users], mean[n_users:]


if __name__ == "__main__":
    # Small, deterministic synthetic problem.
    n_users, n_items, emb_size, n_layers = 16, 24, 32, 2
    N = n_users + n_items

    key = jax.random.PRNGKey(0)
    k_u, k_i, k_s, k_a = jax.random.split(key, 4)

    # Parameters (xavier_uniform init, as in _init_model).
    user_emb = xavier_uniform(k_u, n_users, emb_size)
    item_emb = xavier_uniform(k_i, n_items, emb_size)

    # Deterministic synthetic "sparse" matrices, materialized densely.
    # TODO(synk): real module uses torch.sparse COO tensors; sparse formats are
    # represented densely here (a padded, tiled dense layout for the kernel).
    s_dense = jax.random.uniform(k_s, (n_users, n_users), jnp.float32)
    s_mask = (s_dense > 0.8).astype(jnp.float32)
    row_sum = jnp.maximum(s_mask.sum(axis=1, keepdims=True), 1.0)
    S = s_mask / row_sum

    a_dense = jax.random.uniform(k_a, (N, N), jnp.float32)
    a_mask = (a_dense > 0.85).astype(jnp.float32)
    a_mask = 0.5 * (a_mask + a_mask.T)
    deg = jnp.maximum(a_mask.sum(axis=1), 1.0)
    d_inv_sqrt = 1.0 / jnp.sqrt(deg)
    A = a_mask * d_inv_sqrt[:, None] * d_inv_sqrt[None, :]

    user_all, item_all = lgcn_encoder_forward(S, A, user_emb, item_emb,
                                              n_layers)
    user_all = jax.block_until_ready(user_all)
    item_all = jax.block_until_ready(item_all)

    # Correctness vs. the pure-JAX f32 reference (tolerance relaxed because
    # the kernel uses bf16 MXU inputs with f32 accumulation).
    ref_user, ref_item = reference_forward(S, A, user_emb, item_emb, n_layers)
    assert jnp.allclose(user_all, ref_user, atol=2e-2, rtol=2e-2)
    assert jnp.allclose(item_all, ref_item, atol=2e-2, rtol=2e-2)

    print("KERNEL_OK")
</pallas_src>

<mosaic_0001>
module attributes {stable_mosaic.version = 11 : i64} {
  func.func @adj_matmul_kernel(%arg0: i32, %arg1: i32, %arg2: memref<256x256xbf16, #tpu.memory_space<vmem>>, %arg3: memref<256x128xbf16, #tpu.memory_space<vmem>>, %arg4: memref<256x128xf32, #tpu.memory_space<vmem>>, %arg5: memref<256x128xf32, #tpu.memory_space<vmem>>, %arg6: memref<256x128xf32, #tpu.memory_space<vmem>>) attributes {dimension_semantics = [#tpu.dimension_semantics<parallel>, #tpu.dimension_semantics<arbitrary>], iteration_bounds = array<i64: 1, 1>, scalar_prefetch = 0 : i64, scratch_operands = 1 : i64, tpu.core_type = #tpu.core_type<tc>, window_params = [{transform_indices = @transform_0, window_bounds = array<i64: 256, 256>}, {transform_indices = @transform_1, window_bounds = array<i64: 256, 128>}, {transform_indices = @transform_2, window_bounds = array<i64: 256, 128>}, {transform_indices = @transform_3, window_bounds = array<i64: 256, 128>}]} {
    %c0_i32 = arith.constant 0 : i32
    %0 = arith.cmpi eq, %arg1, %c0_i32 : i32
    %1 = arith.extui %0 : i1 to i32
    %c0_i32_0 = arith.constant 0 : i32
    %2 = arith.cmpi ne, %1, %c0_i32_0 : i32
    scf.if %2 {
      %c0_10 = arith.constant 0 : index
      %c0_11 = arith.constant 0 : index
      %12 = vector.load %arg4[%c0_10, %c0_11] : memref<256x128xf32, #tpu.memory_space<vmem>>, vector<256x128xf32>
      %c0_12 = arith.constant 0 : index
      %c0_13 = arith.constant 0 : index
      %13 = vector.load %arg6[%c0_12, %c0_13] : memref<256x128xf32, #tpu.memory_space<vmem>>, vector<256x128xf32>
      tpu.vector_store %arg6[%c0_12, %c0_13], %12 {strides = array<i32>} : memref<256x128xf32, #tpu.memory_space<vmem>>, vector<256x128xf32>,
    } else {
    }
    %c0 = arith.constant 0 : index
    %c0_1 = arith.constant 0 : index
    %3 = vector.load %arg6[%c0, %c0_1] : memref<256x128xf32, #tpu.memory_space<vmem>>, vector<256x128xf32>
    %c0_2 = arith.constant 0 : index
    %c0_3 = arith.constant 0 : index
    %4 = vector.load %arg2[%c0_2, %c0_3] : memref<256x256xbf16, #tpu.memory_space<vmem>>, vector<256x256xbf16>
    %c0_4 = arith.constant 0 : index
    %c0_5 = arith.constant 0 : index
    %5 = vector.load %arg3[%c0_4, %c0_5] : memref<256x128xbf16, #tpu.memory_space<vmem>>, vector<256x128xbf16>
    %cst = arith.constant dense<0.000000e+00> : vector<256x128xf32>
    %6 = tpu.matmul %4, %5, %cst {dimension_numbers = #tpu.dot_dimension_numbers<[1], [0], [0], [1], [0, 0, 1, 1], [], []>} : vector<256x256xbf16>, vector<256x128xbf16>, vector<256x128xf32> -> vector<256x128xf32>
    %7 = arith.addf %3, %6 : vector<256x128xf32>
    %c0_6 = arith.constant 0 : index
    %c0_7 = arith.constant 0 : index
    %8 = vector.load %arg6[%c0_6, %c0_7] : memref<256x128xf32, #tpu.memory_space<vmem>>, vector<256x128xf32>
    tpu.vector_store %arg6[%c0_6, %c0_7], %7 {strides = array<i32>} : memref<256x128xf32, #tpu.memory_space<vmem>>, vector<256x128xf32>,
    %c0_i32_8 = arith.constant 0 : i32
    %9 = arith.cmpi eq, %arg1, %c0_i32_8 : i32
    %10 = arith.extui %9 : i1 to i32
    %c0_i32_9 = arith.constant 0 : i32
    %11 = arith.cmpi ne, %10, %c0_i32_9 : i32
    scf.if %11 {
      %c0_10 = arith.constant 0 : index
      %c0_11 = arith.constant 0 : index
      %12 = vector.load %arg6[%c0_10, %c0_11] : memref<256x128xf32, #tpu.memory_space<vmem>>, vector<256x128xf32>
      %c0_12 = arith.constant 0 : index
      %c0_13 = arith.constant 0 : index
      %13 = vector.load %arg5[%c0_12, %c0_13] : memref<256x128xf32, #tpu.memory_space<vmem>>, vector<256x128xf32>
      tpu.vector_store %arg5[%c0_12, %c0_13], %12 {strides = array<i32>} : memref<256x128xf32, #tpu.memory_space<vmem>>, vector<256x128xf32>,
    } else {
    }
    return
  }
  func.func @transform_0(%arg0: i32, %arg1: i32) -> (i32, i32) {
    %c0_i32 = arith.constant 0 : i32
    return %arg0, %arg1 : i32, i32
  }
  func.func @transform_1(%arg0: i32, %arg1: i32) -> (i32, i32) {
    %c0_i32 = arith.constant 0 : i32
    %c0_i32_0 = arith.constant 0 : i32
    return %arg1, %c0_i32 : i32, i32
  }
  func.func @transform_2(%arg0: i32, %arg1: i32) -> (i32, i32) {
    %c0_i32 = arith.constant 0 : i32
    %c0_i32_0 = arith.constant 0 : i32
    return %arg0, %c0_i32 : i32, i32
  }
  func.func @transform_3(%arg0: i32, %arg1: i32) -> (i32, i32) {
    %c0_i32 = arith.constant 0 : i32
    %c0_i32_0 = arith.constant 0 : i32
    return %arg0, %c0_i32 : i32, i32
  }
}

</mosaic_0001>

<llo_original>
// kernel: tpu_custom_call.1
$region0: #{tpu_custom_call.1}
  #allocation0 [shape = 'u32[]', space=smem, size = 0x4, offset = 0x4, fixed_abs, tag = 'smem constant byte address 0x4 - core index']
  #allocation1 [shape = 'u32[144,128]{1,0:T(1,128)}', space=vmem, size = 0x12000, scoped, tag = 'internal scratch']
  #allocation2 [shape = 'f32[256,128]{1,0:T(8,128)}', space=vmem, size = 0x20000, scoped, tag = 'scratch operand']
  %s0 = inlined_call_operand.hbm [shape: bf16[256,256], index: 0, kind: input, shape index: {}]
  %s1 = inlined_call_operand.hbm [shape: bf16[256,128], index: 1, kind: input, shape index: {}]
  %s2 = inlined_call_operand.hbm [shape: f32[256,128], index: 2, kind: input, shape index: {}]
  %s3 = inlined_call_operand.hbm [shape: f32[256,128], index: 3, kind: output, shape index: {}]
  %s4 = sld [smem:[#allocation0]]
  $region42: #{tpu_custom_call.1} parent=0
    _
  %s6 = ssub.s32 1, %s4
  %s7 = scalar_select 0, %s6, %s4
  $region1: #{tpu_custom_call.1} parent=0
    #allocation3 [shape = 'u8[131072]{0}', space=vmem, size = 0x20000, scoped, tag = 'input window, operand 0, single buffered']
    #allocation4 [shape = 's32[1]{0}', space=sflag, size = 0x4, scoped, tag = 'scoped memory for tpu_custom_call.1']
    #allocation5 [shape = 's32[1]{0}', space=sflag, size = 0x4, scoped, tag = 'scoped memory for tpu_custom_call.1']
    #allocation6 [shape = 'u8[65536]{0}', space=vmem, size = 0x10000, scoped, tag = 'input window, operand 1, single buffered']
    #allocation7 [shape = 's32[1]{0}', space=sflag, size = 0x4, scoped, tag = 'scoped memory for tpu_custom_call.1']
    #allocation8 [shape = 'u8[131072]{0}', space=vmem, size = 0x20000, scoped, tag = 'input window, operand 2, single buffered']
    #allocation9 [shape = 'u8[131072]{0}', space=vmem, size = 0x20000, scoped, tag = 'output window, operand 0, single buffered']
    %8 = vsyncpa [#allocation4], 0
    %9 = vsyncpa [#allocation7], 0
    %10 = vsyncpa [#allocation5], 0
    // Predicated region
    $region2: #{tpu_custom_call.1} parent=1 // pred_check
      _
    $region3: #{tpu_custom_call.1} parent=1 // pred_check_branch
      %12 = sbr.rel (0) target = $region5
    $region4: #{tpu_custom_call.1} parent=1 // pred_region
      %s14 = ssub.s32 4096, 4096
      %15 = vsyncadd [#allocation4], %s14
      %s16 = sshll.u32 [#allocation3], 4
      %s17 = int_to_ptr.vmem [resolvable:$true] %s16
      %22 = dma.hbm_to_vmem [thread:$0]  %s0, 4096, %s17, [#allocation4], 128, 128, 8
    $region5: #{tpu_custom_call.1} parent=1 // pred_fallthru
      _
    // Predicated region
    $region6: #{tpu_custom_call.1} parent=1 // pred_check
      _
    $region7: #{tpu_custom_call.1} parent=1 // pred_check_branch
      %24 = sbr.rel (0) target = $region9
    $region8: #{tpu_custom_call.1} parent=1 // pred_region
      %s26 = ssub.s32 2048, 2048
      %27 = vsyncadd [#allocation7], %s26
      %s28 = sshll.u32 [#allocation6], 4
      %s29 = int_to_ptr.vmem [resolvable:$true] %s28
      %34 = dma.hbm_to_vmem [thread:$0]  %s1, 2048, %s29, [#allocation7], 64, 64, 4
    $region9: #{tpu_custom_call.1} parent=1 // pred_fallthru
      _
    // Predicated region
    $region10: #{tpu_custom_call.1} parent=1 // pred_check
      _
    $region11: #{tpu_custom_call.1} parent=1 // pred_check_branch
      %36 = sbr.rel (0) target = $region13
    $region12: #{tpu_custom_call.1} parent=1 // pred_region
      %s38 = ssub.s32 4096, 4096
      %39 = vsyncadd [#allocation7], %s38
      %s40 = sshll.u32 [#allocation8], 4
      %s41 = int_to_ptr.vmem [resolvable:$true] %s40
      %46 = dma.hbm_to_vmem [thread:$0]  %s2, 4096, %s41, [#allocation7], 128, 128, 8
    $region13: #{tpu_custom_call.1} parent=1 // pred_fallthru
      _
    // Predicated region
    $region14: #{tpu_custom_call.1} parent=1 // pred_check
      _
    $region15: #{tpu_custom_call.1} parent=1 // pred_check_branch
      %48 = sbr.rel (0) target = $region17
    $region16: #{tpu_custom_call.1} parent=1 // pred_region
      %49 = dma.done [#allocation4], 4096
    $region17: #{tpu_custom_call.1} parent=1 // pred_fallthru
      _
    // Predicated region
    $region18: #{tpu_custom_call.1} parent=1 // pred_check
      _
    $region19: #{tpu_custom_call.1} parent=1 // pred_check_branch
      %51 = sbr.rel (0) target = $region21
    $region20: #{tpu_custom_call.1} parent=1 // pred_region
      %52 = dma.done [#allocation7], 2048
    $region21: #{tpu_custom_call.1} parent=1 // pred_fallthru
      _
    // Predicated region
    $region22: #{tpu_custom_call.1} parent=1 // pred_check
      _
    $region23: #{tpu_custom_call.1} parent=1 // pred_check_branch
      %54 = sbr.rel (0) target = $region25
    $region24: #{tpu_custom_call.1} parent=1 // pred_region
      %55 = dma.done [#allocation7], 4096
    $region25: #{tpu_custom_call.1} parent=1 // pred_fallthru
      _
    %p57 = scmp.eq.s32.totalorder 0, 0
    // Predicated region
    $region26: #{tpu_custom_call.1} parent=1 // pred_check
      %p58 = pneg %p57
    $region27: #{tpu_custom_call.1} parent=1 // pred_check_branch
      %60 = sbr.rel (%p58) target = $region29
    $region28: #{tpu_custom_call.1} parent=1 // pred_region
      %v61 = vld [vmem:[#allocation8] sm:$0xff]
      %v62 = vld [vmem:[#allocation8 + $0x8] sm:$0xff]
      %v63 = vld [vmem:[#allocation8 + $0x10] sm:$0xff]
      %v64 = vld [vmem:[#allocation8 + $0x18] sm:$0xff]
      %v65 = vld [vmem:[#allocation8 + $0x20] sm:$0xff]
      %v66 = vld [vmem:[#allocation8 + $0x28] sm:$0xff]
      %v67 = vld [vmem:[#allocation8 + $0x30] sm:$0xff]
      %v68 = vld [vmem:[#allocation8 + $0x38] sm:$0xff]
      %v69 = vld [vmem:[#allocation8 + $0x40] sm:$0xff]
      %v70 = vld [vmem:[#allocation8 + $0x48] sm:$0xff]
      %v71 = vld [vmem:[#allocation8 + $0x50] sm:$0xff]
      %v72 = vld [vmem:[#allocation8 + $0x58] sm:$0xff]
      %v73 = vld [vmem:[#allocation8 + $0x60] sm:$0xff]
      %v74 = vld [vmem:[#allocation8 + $0x68] sm:$0xff]
      %v75 = vld [vmem:[#allocation8 + $0x70] sm:$0xff]
      %v76 = vld [vmem:[#allocation8 + $0x78] sm:$0xff]
      %v77 = vld [vmem:[#allocation8 + $0x80] sm:$0xff]
      %v78 = vld [vmem:[#allocation8 + $0x88] sm:$0xff]
      %v79 = vld [vmem:[#allocation8 + $0x90] sm:$0xff]
      %v80 = vld [vmem:[#allocation8 + $0x98] sm:$0xff]
      %v81 = vld [vmem:[#allocation8 + $0xa0] sm:$0xff]
      %v82 = vld [vmem:[#allocation8 + $0xa8] sm:$0xff]
      %v83 = vld [vmem:[#allocation8 + $0xb0] sm:$0xff]
      %v84 = vld [vmem:[#allocation8 + $0xb8] sm:$0xff]
      %v85 = vld [vmem:[#allocation8 + $0xc0] sm:$0xff]
      %v86 = vld [vmem:[#allocation8 + $0xc8] sm:$0xff]
      %v87 = vld [vmem:[#allocation8 + $0xd0] sm:$0xff]
      %v88 = vld [vmem:[#allocation8 + $0xd8] sm:$0xff]
      %v89 = vld [vmem:[#allocation8 + $0xe0] sm:$0xff]
      %v90 = vld [vmem:[#allocation8 + $0xe8] sm:$0xff]
      %v91 = vld [vmem:[#allocation8 + $0xf0] sm:$0xff]
      %v92 = vld [vmem:[#allocation8 + $0xf8] sm:$0xff]
      %93 = vst [vmem:[#allocation2] sm:$0xff] %v61
      %94 = vst [vmem:[#allocation2 + $0x8] sm:$0xff] %v62
      %95 = vst [vmem:[#allocation2 + $0x10] sm:$0xff] %v63
      %96 = vst [vmem:[#allocation2 + $0x18] sm:$0xff] %v64
      %97 = vst [vmem:[#allocation2 + $0x20] sm:$0xff] %v65
      %98 = vst [vmem:[#allocation2 + $0x28] sm:$0xff] %v66
      %99 = vst [vmem:[#allocation2 + $0x30] sm:$0xff] %v67
      %100 = vst [vmem:[#allocation2 + $0x38] sm:$0xff] %v68
      %101 = vst [vmem:[#allocation2 + $0x40] sm:$0xff] %v69
      %102 = vst [vmem:[#allocation2 + $0x48] sm:$0xff] %v70
      %103 = vst [vmem:[#allocation2 + $0x50] sm:$0xff] %v71
      %104 = vst [vmem:[#allocation2 + $0x58] sm:$0xff] %v72
      %105 = vst [vmem:[#allocation2 + $0x60] sm:$0xff] %v73
      %106 = vst [vmem:[#allocation2 + $0x68] sm:$0xff] %v74
      %107 = vst [vmem:[#allocation2 + $0x70] sm:$0xff] %v75
      %108 = vst [vmem:[#allocation2 + $0x78] sm:$0xff] %v76
      %109 = vst [vmem:[#allocation2 + $0x80] sm:$0xff] %v77
      %110 = vst [vmem:[#allocation2 + $0x88] sm:$0xff] %v78
      %111 = vst [vmem:[#allocation2 + $0x90] sm:$0xff] %v79
      %112 = vst [vmem:[#allocation2 + $0x98] sm:$0xff] %v80
      %113 = vst [vmem:[#allocation2 + $0xa0] sm:$0xff] %v81
      %114 = vst [vmem:[#allocation2 + $0xa8] sm:$0xff] %v82
      %115 = vst [vmem:[#allocation2 + $0xb0] sm:$0xff] %v83
      %116 = vst [vmem:[#allocation2 + $0xb8] sm:$0xff] %v84
      %117 = vst [vmem:[#allocation2 + $0xc0] sm:$0xff] %v85
      %118 = vst [vmem:[#allocation2 + $0xc8] sm:$0xff] %v86
      %119 = vst [vmem:[#allocation2 + $0xd0] sm:$0xff] %v87
      %120 = vst [vmem:[#allocation2 + $0xd8] sm:$0xff] %v88
      %121 = vst [vmem:[#allocation2 + $0xe0] sm:$0xff] %v89
      %122 = vst [vmem:[#allocation2 + $0xe8] sm:$0xff] %v90
      %123 = vst [vmem:[#allocation2 + $0xf0] sm:$0xff] %v91
      %124 = vst [vmem:[#allocation2 + $0xf8] sm:$0xff] %v92
    $region29: #{tpu_custom_call.1} parent=1 // pred_fallthru
      _
    %v125 = vld [vmem:[#allocation2] sm:$0xff]
    %v126 = vld [vmem:[#allocation2 + $0x8] sm:$0xff]
    %v127 = vld [vmem:[#allocation2 + $0x10] sm:$0xff]
    %v128 = vld [vmem:[#allocation2 + $0x18] sm:$0xff]
    %v129 = vld [vmem:[#allocation2 + $0x20] sm:$0xff]
    %v130 = vld [vmem:[#allocation2 + $0x28] sm:$0xff]
    %v131 = vld [vmem:[#allocation2 + $0x30] sm:$0xff]
    %v132 = vld [vmem:[#allocation2 + $0x38] sm:$0xff]
    %v133 = vld [vmem:[#allocation2 + $0x40] sm:$0xff]
    %v134 = vld [vmem:[#allocation2 + $0x48] sm:$0xff]
    %v135 = vld [vmem:[#allocation2 + $0x50] sm:$0xff]
    %v136 = vld [vmem:[#allocation2 + $0x58] sm:$0xff]
    %v137 = vld [vmem:[#allocation2 + $0x60] sm:$0xff]
    %v138 = vld [vmem:[#allocation2 + $0x68] sm:$0xff]
    %v139 = vld [vmem:[#allocation2 + $0x70] sm:$0xff]
    %v140 = vld [vmem:[#allocation2 + $0x78] sm:$0xff]
    %v141 = vld [vmem:[#allocation2 + $0x80] sm:$0xff]
    %v142 = vld [vmem:[#allocation2 + $0x88] sm:$0xff]
    %v143 = vld [vmem:[#allocation2 + $0x90] sm:$0xff]
    %v144 = vld [vmem:[#allocation2 + $0x98] sm:$0xff]
    %v145 = vld [vmem:[#allocation2 + $0xa0] sm:$0xff]
    %v146 = vld [vmem:[#allocation2 + $0xa8] sm:$0xff]
    %v147 = vld [vmem:[#allocation2 + $0xb0] sm:$0xff]
    %v148 = vld [vmem:[#allocation2 + $0xb8] sm:$0xff]
    %v149 = vld [vmem:[#allocation2 + $0xc0] sm:$0xff]
    %v150 = vld [vmem:[#allocation2 + $0xc8] sm:$0xff]
    %v151 = vld [vmem:[#allocation2 + $0xd0] sm:$0xff]
    %v152 = vld [vmem:[#allocation2 + $0xd8] sm:$0xff]
    %v153 = vld [vmem:[#allocation2 + $0xe0] sm:$0xff]
    %v154 = vld [vmem:[#allocation2 + $0xe8] sm:$0xff]
    %v155 = vld [vmem:[#allocation2 + $0xf0] sm:$0xff]
    %v156 = vld [vmem:[#allocation2 + $0xf8] sm:$0xff]
    %v157 = vld [vmem:[#allocation3] sm:$0xff]
    %v158 = vld [vmem:[#allocation3 + $0x8] sm:$0xff]
    %v159 = vld [vmem:[#allocation3 + $0x10] sm:$0xff]
    %v160 = vld [vmem:[#allocation3 + $0x18] sm:$0xff]
    %v161 = vld [vmem:[#allocation3 + $0x20] sm:$0xff]
    %v162 = vld [vmem:[#allocation3 + $0x28] sm:$0xff]
    %v163 = vld [vmem:[#allocation3 + $0x30] sm:$0xff]
    %v164 = vld [vmem:[#allocation3 + $0x38] sm:$0xff]
    %v165 = vld [vmem:[#allocation3 + $0x40] sm:$0xff]
    %v166 = vld [vmem:[#allocation3 + $0x48] sm:$0xff]
    %v167 = vld [vmem:[#allocation3 + $0x50] sm:$0xff]
    %v168 = vld [vmem:[#allocation3 + $0x58] sm:$0xff]
    %v169 = vld [vmem:[#allocation3 + $0x60] sm:$0xff]
    %v170 = vld [vmem:[#allocation3 + $0x68] sm:$0xff]
    %v171 = vld [vmem:[#allocation3 + $0x70] sm:$0xff]
    %v172 = vld [vmem:[#allocation3 + $0x78] sm:$0xff]
    %v173 = vld [vmem:[#allocation3 + $0x80] sm:$0xff]
    %v174 = vld [vmem:[#allocation3 + $0x88] sm:$0xff]
    %v175 = vld [vmem:[#allocation3 + $0x90] sm:$0xff]
    %v176 = vld [vmem:[#allocation3 + $0x98] sm:$0xff]
    %v177 = vld [vmem:[#allocation3 + $0xa0] sm:$0xff]
    %v178 = vld [vmem:[#allocation3 + $0xa8] sm:$0xff]
    %v179 = vld [vmem:[#allocation3 + $0xb0] sm:$0xff]
    %v180 = vld [vmem:[#allocation3 + $0xb8] sm:$0xff]
    %v181 = vld [vmem:[#allocation3 + $0xc0] sm:$0xff]
    %v182 = vld [vmem:[#allocation3 + $0xc8] sm:$0xff]
    %v183 = vld [vmem:[#allocation3 + $0xd0] sm:$0xff]
    %v184 = vld [vmem:[#allocation3 + $0xd8] sm:$0xff]
    %v185 = vld [vmem:[#allocation3 + $0xe0] sm:$0xff]
    %v186 = vld [vmem:[#allocation3 + $0xe8] sm:$0xff]
    %v187 = vld [vmem:[#allocation3 + $0xf0] sm:$0xff]
    %v188 = vld [vmem:[#allocation3 + $0xf8] sm:$0xff]
    %v189 = vld [vmem:[#allocation6] sm:$0xf]
    %v190 = vld [vmem:[#allocation6 + $0x4] sm:$0xf]
    %v191 = vld [vmem:[#allocation6 + $0x8] sm:$0xf]
    %v192 = vld [vmem:[#allocation6 + $0xc] sm:$0xf]
    %v193 = vld [vmem:[#allocation6 + $0x10] sm:$0xf]
    %v194 = vld [vmem:[#allocation6 + $0x14] sm:$0xf]
    %v195 = vld [vmem:[#allocation6 + $0x18] sm:$0xf]
    %v196 = vld [vmem:[#allocation6 + $0x1c] sm:$0xf]
    %v197 = vld [vmem:[#allocation6 + $0x20] sm:$0xf]
    %v198 = vld [vmem:[#allocation6 + $0x24] sm:$0xf]
    %v199 = vld [vmem:[#allocation6 + $0x28] sm:$0xf]
    %v200 = vld [vmem:[#allocation6 + $0x2c] sm:$0xf]
    %v201 = vld [vmem:[#allocation6 + $0x30] sm:$0xf]
    %v202 = vld [vmem:[#allocation6 + $0x34] sm:$0xf]
    %v203 = vld [vmem:[#allocation6 + $0x38] sm:$0xf]
    %v204 = vld [vmem:[#allocation6 + $0x3c] sm:$0xf]
    %v205 = vld [vmem:[#allocation6 + $0x40] sm:$0xf]
    %v206 = vld [vmem:[#allocation6 + $0x44] sm:$0xf]
    %v207 = vld [vmem:[#allocation6 + $0x48] sm:$0xf]
    %v208 = vld [vmem:[#allocation6 + $0x4c] sm:$0xf]
    %v209 = vld [vmem:[#allocation6 + $0x50] sm:$0xf]
    %v210 = vld [vmem:[#allocation6 + $0x54] sm:$0xf]
    %v211 = vld [vmem:[#allocation6 + $0x58] sm:$0xf]
    %v212 = vld [vmem:[#allocation6 + $0x5c] sm:$0xf]
    %v213 = vld [vmem:[#allocation6 + $0x60] sm:$0xf]
    %v214 = vld [vmem:[#allocation6 + $0x64] sm:$0xf]
    %v215 = vld [vmem:[#allocation6 + $0x68] sm:$0xf]
    %v216 = vld [vmem:[#allocation6 + $0x6c] sm:$0xf]
    %v217 = vld [vmem:[#allocation6 + $0x70] sm:$0xf]
    %v218 = vld [vmem:[#allocation6 + $0x74] sm:$0xf]
    %v219 = vld [vmem:[#allocation6 + $0x78] sm:$0xf]
    %v220 = vld [vmem:[#allocation6 + $0x7c] sm:$0xf]
    %v253 = vunpack.c.l.b16 %v157
    %v254 = vunpack.c.h.b16 %v157
    %v255 = vunpack.c.l.b16 %v158
    %v256 = vunpack.c.h.b16 %v158
    %v257 = vunpack.c.l.b16 %v159
    %v258 = vunpack.c.h.b16 %v159
    %v259 = vunpack.c.l.b16 %v160
    %v260 = vunpack.c.h.b16 %v160
    %v261 = vunpack.c.l.b16 %v161
    %v262 = vunpack.c.h.b16 %v161
    %v263 = vunpack.c.l.b16 %v162
    %v264 = vunpack.c.h.b16 %v162
    %v265 = vunpack.c.l.b16 %v163
    %v266 = vunpack.c.h.b16 %v163
    %v267 = vunpack.c.l.b16 %v164
    %v268 = vunpack.c.h.b16 %v164
    %v269 = vunpack.c.l.b16 %v165
    %v270 = vunpack.c.h.b16 %v165
    %v271 = vunpack.c.l.b16 %v166
    %v272 = vunpack.c.h.b16 %v166
    %v273 = vunpack.c.l.b16 %v167
    %v274 = vunpack.c.h.b16 %v167
    %v275 = vunpack.c.l.b16 %v168
    %v276 = vunpack.c.h.b16 %v168
    %v277 = vunpack.c.l.b16 %v169
    %v278 = vunpack.c.h.b16 %v169
    %v279 = vunpack.c.l.b16 %v170
    %v280 = vunpack.c.h.b16 %v170
    %v281 = vunpack.c.l.b16 %v171
    %v282 = vunpack.c.h.b16 %v171
    %v283 = vunpack.c.l.b16 %v172
    %v284 = vunpack.c.h.b16 %v172
    %v285 = vunpack.c.l.b16 %v173
    %v286 = vunpack.c.h.b16 %v173
    %v287 = vunpack.c.l.b16 %v174
    %v288 = vunpack.c.h.b16 %v174
    %v289 = vunpack.c.l.b16 %v175
    %v290 = vunpack.c.h.b16 %v175
    %v291 = vunpack.c.l.b16 %v176
    %v292 = vunpack.c.h.b16 %v176
    %v293 = vunpack.c.l.b16 %v177
    %v294 = vunpack.c.h.b16 %v177
    %v295 = vunpack.c.l.b16 %v178
    %v296 = vunpack.c.h.b16 %v178
    %v297 = vunpack.c.l.b16 %v179
    %v298 = vunpack.c.h.b16 %v179
    %v299 = vunpack.c.l.b16 %v180
    %v300 = vunpack.c.h.b16 %v180
    %v301 = vunpack.c.l.b16 %v181
    %v302 = vunpack.c.h.b16 %v181
    %v303 = vunpack.c.l.b16 %v182
    %v304 = vunpack.c.h.b16 %v182
    %v305 = vunpack.c.l.b16 %v183
    %v306 = vunpack.c.h.b16 %v183
    %v307 = vunpack.c.l.b16 %v184
    %v308 = vunpack.c.h.b16 %v184
    %v309 = vunpack.c.l.b16 %v185
    %v310 = vunpack.c.h.b16 %v185
    %v311 = vunpack.c.l.b16 %v186
    %v312 = vunpack.c.h.b16 %v186
    %v313 = vunpack.c.l.b16 %v187
    %v314 = vunpack.c.h.b16 %v187
    %v315 = vunpack.c.l.b16 %v188
    %v316 = vunpack.c.h.b16 %v188
    %v317 = vpack.c.b16 %v255, %v253
    %v318 = vpack.c.b16 %v256, %v254
    %v319 = vpack.c.b16 %v259, %v257
    %v320 = vpack.c.b16 %v260, %v258
    %v321 = vpack.c.b16 %v263, %v261
    %v322 = vpack.c.b16 %v264, %v262
    %v323 = vpack.c.b16 %v267, %v265
    %v324 = vpack.c.b16 %v268, %v266
    %v325 = vpack.c.b16 %v271, %v269
    %v326 = vpack.c.b16 %v272, %v270
    %v327 = vpack.c.b16 %v275, %v273
    %v328 = vpack.c.b16 %v276, %v274
    %v329 = vpack.c.b16 %v279, %v277
    %v330 = vpack.c.b16 %v280, %v278
    %v331 = vpack.c.b16 %v283, %v281
    %v332 = vpack.c.b16 %v284, %v282
    %v333 = vpack.c.b16 %v287, %v285
    %v334 = vpack.c.b16 %v288, %v286
    %v335 = vpack.c.b16 %v291, %v289
    %v336 = vpack.c.b16 %v292, %v290
    %v337 = vpack.c.b16 %v295, %v293
    %v338 = vpack.c.b16 %v296, %v294
    %v339 = vpack.c.b16 %v299, %v297
    %v340 = vpack.c.b16 %v300, %v298
    %v341 = vpack.c.b16 %v303, %v301
    %v342 = vpack.c.b16 %v304, %v302
    %v343 = vpack.c.b16 %v307, %v305
    %v344 = vpack.c.b16 %v308, %v306
    %v345 = vpack.c.b16 %v311, %v309
    %v346 = vpack.c.b16 %v312, %v310
    %v347 = vpack.c.b16 %v315, %v313
    %v348 = vpack.c.b16 %v316, %v314
    %v413 = vunpack.c.l.b16 %v189
    %v414 = vunpack.c.l.b16 %v190
    %v415 = vunpack.c.l.b16 %v191
    %v416 = vunpack.c.l.b16 %v192
    %v417 = vunpack.c.l.b16 %v193
    %v418 = vunpack.c.l.b16 %v194
    %v419 = vunpack.c.l.b16 %v195
    %v420 = vunpack.c.l.b16 %v196
    %v421 = vunpack.c.l.b16 %v197
    %v422 = vunpack.c.l.b16 %v198
    %v423 = vunpack.c.l.b16 %v199
    %v424 = vunpack.c.l.b16 %v200
    %v425 = vunpack.c.l.b16 %v201
    %v426 = vunpack.c.l.b16 %v202
    %v427 = vunpack.c.l.b16 %v203
    %v428 = vunpack.c.l.b16 %v204
    %v429 = vunpack.c.l.b16 %v205
    %v430 = vunpack.c.l.b16 %v206
    %v431 = vunpack.c.l.b16 %v207
    %v432 = vunpack.c.l.b16 %v208
    %v433 = vunpack.c.l.b16 %v209
    %v434 = vunpack.c.l.b16 %v210
    %v435 = vunpack.c.l.b16 %v211
    %v436 = vunpack.c.l.b16 %v212
    %v437 = vunpack.c.l.b16 %v213
    %v438 = vunpack.c.l.b16 %v214
    %v439 = vunpack.c.l.b16 %v215
    %v440 = vunpack.c.l.b16 %v216
    %v441 = vunpack.c.l.b16 %v217
    %v442 = vunpack.c.l.b16 %v218
    %v443 = vunpack.c.l.b16 %v219
    %v444 = vunpack.c.l.b16 %v220
    %v445 = vpack.c.b16 %v414, %v413
    %v446 = vpack.c.b16 %v416, %v415
    %v447 = vpack.c.b16 %v418, %v417
    %v448 = vpack.c.b16 %v420, %v419
    %v449 = vpack.c.b16 %v422, %v421
    %v450 = vpack.c.b16 %v424, %v423
    %v451 = vpack.c.b16 %v426, %v425
    %v452 = vpack.c.b16 %v428, %v427
    %v453 = vpack.c.b16 %v430, %v429
    %v454 = vpack.c.b16 %v432, %v431
    %v455 = vpack.c.b16 %v434, %v433
    %v456 = vpack.c.b16 %v436, %v435
    %v457 = vpack.c.b16 %v438, %v437
    %v458 = vpack.c.b16 %v440, %v439
    %v459 = vpack.c.b16 %v442, %v441
    %v460 = vpack.c.b16 %v444, %v443
    %477 = vmatprep.subr.bf16.mxu0 0
    %478 = vmatpush1.bf16.msra.mxu0 %v445
    %479 = vmatprep.subr.bf16.mxu0 0
    %480 = vmatpush1.bf16.msra.mxu0 %v446
    %481 = vmatprep.subr.bf16.mxu0 0
    %482 = vmatpush1.bf16.msra.mxu0 %v447
    %483 = vmatprep.subr.bf16.mxu0 0
    %484 = vmatpush1.bf16.msra.mxu0 %v448
    %485 = vmatprep.subr.bf16.mxu0 0
    %486 = vmatpush1.bf16.msra.mxu0 %v449
    %487 = vmatprep.subr.bf16.mxu0 0
    %488 = vmatpush1.bf16.msra.mxu0 %v450
    %489 = vmatprep.subr.bf16.mxu0 0
    %490 = vmatpush1.bf16.msra.mxu0 %v451
    %491 = vmatprep.subr.bf16.mxu0 0
    %492 = vmatpush1.bf16.msra.mxu0 %v452
    %493 = vmatprep.subr.bf16.mxu0 0
    %494 = vmatpush1.bf16.msra.mxu0 %v453
    %495 = vmatprep.subr.bf16.mxu0 0
    %496 = vmatpush1.bf16.msra.mxu0 %v454
    %497 = vmatprep.subr.bf16.mxu0 0
    %498 = vmatpush1.bf16.msra.mxu0 %v455
    %499 = vmatprep.subr.bf16.mxu0 0
    %500 = vmatpush1.bf16.msra.mxu0 %v456
    %501 = vmatprep.subr.bf16.mxu0 0
    %502 = vmatpush1.bf16.msra.mxu0 %v457
    %503 = vmatprep.subr.bf16.mxu0 0
    %504 = vmatpush1.bf16.msra.mxu0 %v458
    %505 = vmatprep.subr.bf16.mxu0 0
    %506 = vmatpush1.bf16.msra.mxu0 %v459
    %507 = vmatprep.subr.bf16.mxu0 0
    %508 = vmatpush1.bf16.msra.mxu0 %v460
    %509 = vmatprep.mubr.bf16.mxu0 %v318
    %510 = vmatmul.mubr.bf16.gmra.mrb[0].mxu0 %v317
    %v511 = vpop.f32.mrb[0].mxu0
    %v512 = vadd.f32 0.0, %v511
    %v513 = vpop.f32.mrb[0].mxu0
    %v514 = vpop.f32.mrb[0].mxu0
    %v515 = vadd.f32 0.0, %v514
    %v516 = vpop.f32.mrb[0].mxu0
    %517 = vmatprep.mubr.bf16.mxu0 %v320
    %518 = vmatmul.mubr.bf16.gmra.mrb[0].mxu0 %v319
    %v519 = vpop.f32.mrb[0].mxu0
    %v520 = vadd.f32 0.0, %v519
    %v521 = vpop.f32.mrb[0].mxu0
    %v522 = vpop.f32.mrb[0].mxu0
    %v523 = vadd.f32 0.0, %v522
    %v524 = vpop.f32.mrb[0].mxu0
    %525 = vmatprep.mubr.bf16.mxu0 %v322
    %526 = vmatmul.mubr.bf16.gmra.mrb[0].mxu0 %v321
    %v527 = vpop.f32.mrb[0].mxu0
    %v528 = vadd.f32 0.0, %v527
    %v529 = vpop.f32.mrb[0].mxu0
    %v530 = vpop.f32.mrb[0].mxu0
    %v531 = vadd.f32 0.0, %v530
    %v532 = vpop.f32.mrb[0].mxu0
    %533 = vmatprep.mubr.bf16.mxu0 %v324
    %534 = vmatmul.mubr.bf16.gmra.mrb[0].mxu0 %v323
    %v535 = vpop.f32.mrb[0].mxu0
    %v536 = vadd.f32 0.0, %v535
    %v537 = vpop.f32.mrb[0].mxu0
    %v538 = vpop.f32.mrb[0].mxu0
    %v539 = vadd.f32 0.0, %v538
    %v540 = vpop.f32.mrb[0].mxu0
    %541 = vmatprep.mubr.bf16.mxu0 %v326
    %542 = vmatmul.mubr.bf16.gmra.mrb[0].mxu0 %v325
    %v543 = vpop.f32.mrb[0].mxu0
    %v544 = vadd.f32 0.0, %v543
    %v545 = vpop.f32.mrb[0].mxu0
    %v546 = vpop.f32.mrb[0].mxu0
    %v547 = vadd.f32 0.0, %v546
    %v548 = vpop.f32.mrb[0].mxu0
    %549 = vmatprep.mubr.bf16.mxu0 %v328
    %550 = vmatmul.mubr.bf16.gmra.mrb[0].mxu0 %v327
    %v551 = vpop.f32.mrb[0].mxu0
    %v552 = vadd.f32 0.0, %v551
    %v553 = vpop.f32.mrb[0].mxu0
    %v554 = vpop.f32.mrb[0].mxu0
    %v555 = vadd.f32 0.0, %v554
    %v556 = vpop.f32.mrb[0].mxu0
    %557 = vmatprep.mubr.bf16.mxu0 %v330
    %558 = vmatmul.mubr.bf16.gmra.mrb[0].mxu0 %v329
    %v559 = vpop.f32.mrb[0].mxu0
    %v560 = vadd.f32 0.0, %v559
    %v561 = vpop.f32.mrb[0].mxu0
    %v562 = vpop.f32.mrb[0].mxu0
    %v563 = vadd.f32 0.0, %v562
    %v564 = vpop.f32.mrb[0].mxu0
    %565 = vmatprep.mubr.bf16.mxu0 %v332
    %566 = vmatmul.mubr.bf16.gmra.mrb[0].mxu0 %v331
    %v567 = vpop.f32.mrb[0].mxu0
    %v568 = vadd.f32 0.0, %v567
    %v569 = vpop.f32.mrb[0].mxu0
    %v570 = vpop.f32.mrb[0].mxu0
    %v571 = vadd.f32 0.0, %v570
    %v572 = vpop.f32.mrb[0].mxu0
    %573 = vmatprep.mubr.bf16.mxu0 %v334
    %574 = vmatmul.mubr.bf16.gmra.mrb[0].mxu0 %v333
    %v575 = vpop.f32.mrb[0].mxu0
    %v576 = vadd.f32 0.0, %v575
    %v577 = vpop.f32.mrb[0].mxu0
    %v578 = vpop.f32.mrb[0].mxu0
    %v579 = vadd.f32 0.0, %v578
    %v580 = vpop.f32.mrb[0].mxu0
    %581 = vmatprep.mubr.bf16.mxu0 %v336
    %582 = vmatmul.mubr.bf16.gmra.mrb[0].mxu0 %v335
    %v583 = vpop.f32.mrb[0].mxu0
    %v584 = vadd.f32 0.0, %v583
    %v585 = vpop.f32.mrb[0].mxu0
    %v586 = vpop.f32.mrb[0].mxu0
    %v587 = vadd.f32 0.0, %v586
    %v588 = vpop.f32.mrb[0].mxu0
    %589 = vmatprep.mubr.bf16.mxu0 %v338
    %590 = vmatmul.mubr.bf16.gmra.mrb[0].mxu0 %v337
    %v591 = vpop.f32.mrb[0].mxu0
    %v592 = vadd.f32 0.0, %v591
    %v593 = vpop.f32.mrb[0].mxu0
    %v594 = vpop.f32.mrb[0].mxu0
    %v595 = vadd.f32 0.0, %v594
    %v596 = vpop.f32.mrb[0].mxu0
    %597 = vmatprep.mubr.bf16.mxu0 %v340
    %598 = vmatmul.mubr.bf16.gmra.mrb[0].mxu0 %v339
    %v599 = vpop.f32.mrb[0].mxu0
    %v600 = vadd.f32 0.0, %v599
    %v601 = vpop.f32.mrb[0].mxu0
    %v602 = vpop.f32.mrb[0].mxu0
    %v603 = vadd.f32 0.0, %v602
    %v604 = vpop.f32.mrb[0].mxu0
    %605 = vmatprep.mubr.bf16.mxu0 %v342
    %606 = vmatmul.mubr.bf16.gmra.mrb[0].mxu0 %v341
    %v607 = vpop.f32.mrb[0].mxu0
    %v608 = vadd.f32 0.0, %v607
    %v609 = vpop.f32.mrb[0].mxu0
    %v610 = vpop.f32.mrb[0].mxu0
    %v611 = vadd.f32 0.0, %v610
    %v612 = vpop.f32.mrb[0].mxu0
    %613 = vmatprep.mubr.bf16.mxu0 %v344
    %614 = vmatmul.mubr.bf16.gmra.mrb[0].mxu0 %v343
    %v615 = vpop.f32.mrb[0].mxu0
    %v616 = vadd.f32 0.0, %v615
    %v617 = vpop.f32.mrb[0].mxu0
    %v618 = vpop.f32.mrb[0].mxu0
    %v619 = vadd.f32 0.0, %v618
    %v620 = vpop.f32.mrb[0].mxu0
    %621 = vmatprep.mubr.bf16.mxu0 %v346
    %622 = vmatmul.mubr.bf16.gmra.mrb[0].mxu0 %v345
    %v623 = vpop.f32.mrb[0].mxu0
    %v624 = vadd.f32 0.0, %v623
    %v625 = vpop.f32.mrb[0].mxu0
    %v626 = vpop.f32.mrb[0].mxu0
    %v627 = vadd.f32 0.0, %v626
    %v628 = vpop.f32.mrb[0].mxu0
    %629 = vmatprep.mubr.bf16.mxu0 %v348
    %630 = vmatmul.mubr.bf16.gmra.mrb[0].mxu0 %v347
    %v631 = vpop.f32.mrb[0].mxu0
    %v632 = vadd.f32 0.0, %v631
    %v633 = vpop.f32.mrb[0].mxu0
    %v634 = vpop.f32.mrb[0].mxu0
    %v635 = vadd.f32 0.0, %v634
    %v636 = vpop.f32.mrb[0].mxu0
    %637 = vdwg.mxu0
    %v638 = vadd.f32 %v125, %v512
    %v639 = vadd.f32 %v126, %v515
    %v640 = vadd.f32 %v127, %v520
    %v641 = vadd.f32 %v128, %v523
    %v642 = vadd.f32 %v129, %v528
    %v643 = vadd.f32 %v130, %v531
    %v644 = vadd.f32 %v131, %v536
    %v645 = vadd.f32 %v132, %v539
    %v646 = vadd.f32 %v133, %v544
    %v647 = vadd.f32 %v134, %v547
    %v648 = vadd.f32 %v135, %v552
    %v649 = vadd.f32 %v136, %v555
    %v650 = vadd.f32 %v137, %v560
    %v651 = vadd.f32 %v138, %v563
    %v652 = vadd.f32 %v139, %v568
    %v653 = vadd.f32 %v140, %v571
    %v654 = vadd.f32 %v141, %v576
    %v655 = vadd.f32 %v142, %v579
    %v656 = vadd.f32 %v143, %v584
    %v657 = vadd.f32 %v144, %v587
    %v658 = vadd.f32 %v145, %v592
    %v659 = vadd.f32 %v146, %v595
    %v660 = vadd.f32 %v147, %v600
    %v661 = vadd.f32 %v148, %v603
    %v662 = vadd.f32 %v149, %v608
    %v663 = vadd.f32 %v150, %v611
    %v664 = vadd.f32 %v151, %v616
    %v665 = vadd.f32 %v152, %v619
    %v666 = vadd.f32 %v153, %v624
    %v667 = vadd.f32 %v154, %v627
    %v668 = vadd.f32 %v155, %v632
    %v669 = vadd.f32 %v156, %v635
    %670 = vst [vmem:[#allocation2] sm:$0xff] %v638
    %671 = vst [vmem:[#allocation2 + $0x8] sm:$0xff] %v639
    %672 = vst [vmem:[#allocation2 + $0x10] sm:$0xff] %v640
    %673 = vst [vmem:[#allocation2 + $0x18] sm:$0xff] %v641
    %674 = vst [vmem:[#allocation2 + $0x20] sm:$0xff] %v642
    %675 = vst [vmem:[#allocation2 + $0x28] sm:$0xff] %v643
    %676 = vst [vmem:[#allocation2 + $0x30] sm:$0xff] %v644
    %677 = vst [vmem:[#allocation2 + $0x38] sm:$0xff] %v645
    %678 = vst [vmem:[#allocation2 + $0x40] sm:$0xff] %v646
    %679 = vst [vmem:[#allocation2 + $0x48] sm:$0xff] %v647
    %680 = vst [vmem:[#allocation2 + $0x50] sm:$0xff] %v648
    %681 = vst [vmem:[#allocation2 + $0x58] sm:$0xff] %v649
    %682 = vst [vmem:[#allocation2 + $0x60] sm:$0xff] %v650
    %683 = vst [vmem:[#allocation2 + $0x68] sm:$0xff] %v651
    %684 = vst [vmem:[#allocation2 + $0x70] sm:$0xff] %v652
    %685 = vst [vmem:[#allocation2 + $0x78] sm:$0xff] %v653
    %686 = vst [vmem:[#allocation2 + $0x80] sm:$0xff] %v654
    %687 = vst [vmem:[#allocation2 + $0x88] sm:$0xff] %v655
    %688 = vst [vmem:[#allocation2 + $0x90] sm:$0xff] %v656
    %689 = vst [vmem:[#allocation2 + $0x98] sm:$0xff] %v657
    %690 = vst [vmem:[#allocation2 + $0xa0] sm:$0xff] %v658
    %691 = vst [vmem:[#allocation2 + $0xa8] sm:$0xff] %v659
    %692 = vst [vmem:[#allocation2 + $0xb0] sm:$0xff] %v660
    %693 = vst [vmem:[#allocation2 + $0xb8] sm:$0xff] %v661
    %694 = vst [vmem:[#allocation2 + $0xc0] sm:$0xff] %v662
    %695 = vst [vmem:[#allocation2 + $0xc8] sm:$0xff] %v663
    %696 = vst [vmem:[#allocation2 + $0xd0] sm:$0xff] %v664
    %697 = vst [vmem:[#allocation2 + $0xd8] sm:$0xff] %v665
    %698 = vst [vmem:[#allocation2 + $0xe0] sm:$0xff] %v666
    %699 = vst [vmem:[#allocation2 + $0xe8] sm:$0xff] %v667
    %700 = vst [vmem:[#allocation2 + $0xf0] sm:$0xff] %v668
    %701 = vst [vmem:[#allocation2 + $0xf8] sm:$0xff] %v669
    // Predicated region
    $region30: #{tpu_custom_call.1} parent=1 // pred_check
      %p702 = pneg %p57
    $region31: #{tpu_custom_call.1} parent=1 // pred_check_branch
      %704 = sbr.rel (%p702) target = $region33
    $region32: #{tpu_custom_call.1} parent=1 // pred_region
      %v705 = vld [vmem:[#allocation2] sm:$0xff]
      %v706 = vld [vmem:[#allocation2 + $0x8] sm:$0xff]
      %v707 = vld [vmem:[#allocation2 + $0x10] sm:$0xff]
      %v708 = vld [vmem:[#allocation2 + $0x18] sm:$0xff]
      %v709 = vld [vmem:[#allocation2 + $0x20] sm:$0xff]
      %v710 = vld [vmem:[#allocation2 + $0x28] sm:$0xff]
      %v711 = vld [vmem:[#allocation2 + $0x30] sm:$0xff]
      %v712 = vld [vmem:[#allocation2 + $0x38] sm:$0xff]
      %v713 = vld [vmem:[#allocation2 + $0x40] sm:$0xff]
      %v714 = vld [vmem:[#allocation2 + $0x48] sm:$0xff]
      %v715 = vld [vmem:[#allocation2 + $0x50] sm:$0xff]
      %v716 = vld [vmem:[#allocation2 + $0x58] sm:$0xff]
      %v717 = vld [vmem:[#allocation2 + $0x60] sm:$0xff]
      %v718 = vld [vmem:[#allocation2 + $0x68] sm:$0xff]
      %v719 = vld [vmem:[#allocation2 + $0x70] sm:$0xff]
      %v720 = vld [vmem:[#allocation2 + $0x78] sm:$0xff]
      %v721 = vld [vmem:[#allocation2 + $0x80] sm:$0xff]
      %v722 = vld [vmem:[#allocation2 + $0x88] sm:$0xff]
      %v723 = vld [vmem:[#allocation2 + $0x90] sm:$0xff]
      %v724 = vld [vmem:[#allocation2 + $0x98] sm:$0xff]
      %v725 = vld [vmem:[#allocation2 + $0xa0] sm:$0xff]
      %v726 = vld [vmem:[#allocation2 + $0xa8] sm:$0xff]
      %v727 = vld [vmem:[#allocation2 + $0xb0] sm:$0xff]
      %v728 = vld [vmem:[#allocation2 + $0xb8] sm:$0xff]
      %v729 = vld [vmem:[#allocation2 + $0xc0] sm:$0xff]
      %v730 = vld [vmem:[#allocation2 + $0xc8] sm:$0xff]
      %v731 = vld [vmem:[#allocation2 + $0xd0] sm:$0xff]
      %v732 = vld [vmem:[#allocation2 + $0xd8] sm:$0xff]
      %v733 = vld [vmem:[#allocation2 + $0xe0] sm:$0xff]
      %v734 = vld [vmem:[#allocation2 + $0xe8] sm:$0xff]
      %v735 = vld [vmem:[#allocation2 + $0xf0] sm:$0xff]
      %v736 = vld [vmem:[#allocation2 + $0xf8] sm:$0xff]
      %737 = vst [vmem:[#allocation9] sm:$0xff] %v705
      %738 = vst [vmem:[#allocation9 + $0x8] sm:$0xff] %v706
      %739 = vst [vmem:[#allocation9 + $0x10] sm:$0xff] %v707
      %740 = vst [vmem:[#allocation9 + $0x18] sm:$0xff] %v708
      %741 = vst [vmem:[#allocation9 + $0x20] sm:$0xff] %v709
      %742 = vst [vmem:[#allocation9 + $0x28] sm:$0xff] %v710
      %743 = vst [vmem:[#allocation9 + $0x30] sm:$0xff] %v711
      %744 = vst [vmem:[#allocation9 + $0x38] sm:$0xff] %v712
      %745 = vst [vmem:[#allocation9 + $0x40] sm:$0xff] %v713
      %746 = vst [vmem:[#allocation9 + $0x48] sm:$0xff] %v714
      %747 = vst [vmem:[#allocation9 + $0x50] sm:$0xff] %v715
      %748 = vst [vmem:[#allocation9 + $0x58] sm:$0xff] %v716
      %749 = vst [vmem:[#allocation9 + $0x60] sm:$0xff] %v717
      %750 = vst [vmem:[#allocation9 + $0x68] sm:$0xff] %v718
      %751 = vst [vmem:[#allocation9 + $0x70] sm:$0xff] %v719
      %752 = vst [vmem:[#allocation9 + $0x78] sm:$0xff] %v720
      %753 = vst [vmem:[#allocation9 + $0x80] sm:$0xff] %v721
      %754 = vst [vmem:[#allocation9 + $0x88] sm:$0xff] %v722
      %755 = vst [vmem:[#allocation9 + $0x90] sm:$0xff] %v723
      %756 = vst [vmem:[#allocation9 + $0x98] sm:$0xff] %v724
      %757 = vst [vmem:[#allocation9 + $0xa0] sm:$0xff] %v725
      %758 = vst [vmem:[#allocation9 + $0xa8] sm:$0xff] %v726
      %759 = vst [vmem:[#allocation9 + $0xb0] sm:$0xff] %v727
      %760 = vst [vmem:[#allocation9 + $0xb8] sm:$0xff] %v728
      %761 = vst [vmem:[#allocation9 + $0xc0] sm:$0xff] %v729
      %762 = vst [vmem:[#allocation9 + $0xc8] sm:$0xff] %v730
      %763 = vst [vmem:[#allocation9 + $0xd0] sm:$0xff] %v731
      %764 = vst [vmem:[#allocation9 + $0xd8] sm:$0xff] %v732
      %765 = vst [vmem:[#allocation9 + $0xe0] sm:$0xff] %v733
      %766 = vst [vmem:[#allocation9 + $0xe8] sm:$0xff] %v734
      %767 = vst [vmem:[#allocation9 + $0xf0] sm:$0xff] %v735
      %768 = vst [vmem:[#allocation9 + $0xf8] sm:$0xff] %v736
    $region33: #{tpu_custom_call.1} parent=1 // pred_fallthru
      _
    // Predicated region
    $region34: #{tpu_custom_call.1} parent=1 // pred_check
      _
    $region35: #{tpu_custom_call.1} parent=1 // pred_check_branch
      %770 = sbr.rel (0) target = $region37
    $region36: #{tpu_custom_call.1} parent=1 // pred_region
      %s772 = ssub.s32 4096, 4096
      %773 = vsyncadd [#allocation5], %s772
      %s774 = sshll.u32 [#allocation9], 4
      %s775 = int_to_ptr.vmem [resolvable:$true] %s774
      %780 = dma.vmem_to_hbm [thread:$0]  %s775, 4096, %s3, [#allocation5], 128, 128, 8
    $region37: #{tpu_custom_call.1} parent=1 // pred_fallthru
      _
    // Predicated region
    $region38: #{tpu_custom_call.1} parent=1 // pred_check
      _
    $region39: #{tpu_custom_call.1} parent=1 // pred_check_branch
      %782 = sbr.rel (0) target = $region41
    $region40: #{tpu_custom_call.1} parent=1 // pred_region
      %783 = dma.done [#allocation5], 4096
    $region41: #{tpu_custom_call.1} parent=1 // pred_fallthru
      _
    %784 = vsyncpa [#allocation4], 1
    %785 = vsyncpa [#allocation7], 1
    %786 = vsyncpa [#allocation5], 1

</llo_original>
